<compile_context>
chip_gen: v6e
topology: v6e:2x2x1
jax: 0.10.0
libtpu: 0.0.40
codegen_flags: <defaults>
</compile_context>

<pallas_src>
import jax
import jax.numpy as jnp
from jax.experimental import pallas as pl
from jax.experimental.pallas import tpu as pltpu

# Pixels per grid step along the lane axis.  16384 f32 pixels => ~5 MiB of
# double-buffered VMEM (inputs sublane-padded 3->8, plus the Cout=8 output),
# safely under every generation's scoped-VMEM default while making per-step DMA
# time dominate the ~0.35us fixed grid-step overhead.
MAX_TILE_HW = 16384

# Fast-path threshold: total pixels (N * padded H*W) handled in one grid step.
SMALL_PIXELS = 4096


def _round_up(x: int, m: int) -> int:
    return ((x + m - 1) // m) * m


def _choose_tiling(hw: int, n: int):
    """Pick (tile_hw, hw_pad): lane-dense tile (multiple of 128) and padded H*W.

    hw_pad = tile_hw * num_tiles, so every spatial block is full and lane-dense.
    """
    hw128 = _round_up(hw, 128)
    num_tiles = pl.cdiv(hw128, MAX_TILE_HW)
    # Keep >= 2 parallel grid iterations when N == 1 so both v7x TensorCores
    # (and megacore sharding in general) get work instead of idling.
    if n == 1 and num_tiles == 1 and hw128 >= 256:
        num_tiles = 2
    tile_hw = _round_up(pl.cdiv(hw128, num_tiles), 128)
    return tile_hw, tile_hw * num_tiles


def _fused_conv1x1_kernel(x1_ref, x2_ref, w13_ref, w24_ref, b_ref, o_ref):
    # x*_ref: (1, Cin, TILE_HW)   w*_ref: (Cout, Cin)   b_ref: (Cout, 1)
    # o_ref : (1, Cout, TILE_HW)  -- lane-dense output tile (full vst stores)
    acc = jnp.dot(w13_ref[...], x1_ref[0], preferred_element_type=jnp.float32)
    acc = acc + jnp.dot(w24_ref[...], x2_ref[0], preferred_element_type=jnp.float32)
    o_ref[0] = (acc + b_ref[...]).astype(o_ref.dtype)   # bias broadcasts over lanes


def _fused_conv1x1_small_kernel(x1_ref, x2_ref, w13_ref, w24_ref, b_ref, o_ref):
    # Small-problem fast path: full-extent blocks, single grid step, statically
    # unrolled loop over the (tiny) batch dimension.
    # x*_ref: (N, Cin, HW_pad)   o_ref: (N, Cout, HW_pad)
    for i in range(x1_ref.shape[0]):
        acc = jnp.dot(w13_ref[...], x1_ref[i], preferred_element_type=jnp.float32)
        acc = acc + jnp.dot(w24_ref[...], x2_ref[i], preferred_element_type=jnp.float32)
        o_ref[i] = (acc + b_ref[...]).astype(o_ref.dtype)


def fused_model_forward(x1, x2, w1, w2, w3, w4, b1, b2, b3, b4):
    """x1, x2: NCHW float32.  w*: (Cout, Cin) (from PyTorch (Cout, Cin, 1, 1)).  b*: (Cout,)."""
    N, Cin, H, W = x1.shape
    Cout = w1.shape[0]
    HW = H * W

    # Free reshapes (no data movement): NCHW -> (N, Cin, H*W).
    x1_r = x1.reshape(N, Cin, HW).astype(jnp.float32)
    x2_r = x2.reshape(N, Cin, HW).astype(jnp.float32)

    tile_hw, hw_pad = _choose_tiling(HW, N)
    if hw_pad != HW:
        # Pad the spatial axis so every block (and the output lane dim) is a
        # full multiple of 128 -> unmasked vector stores, no ragged tail tile.
        pad = ((0, 0), (0, 0), (0, hw_pad - HW))
        x1_r = jnp.pad(x1_r, pad)
        x2_r = jnp.pad(x2_r, pad)

    # Fold the four 1x1-conv weight matrices into two (exact: dot is linear in W).
    w13 = (w1 + w3).astype(jnp.float32)              # (Cout, Cin)
    w24 = (2.0 * w2 + w4).astype(jnp.float32)        # (Cout, Cin)
    # Combined bias (b2 counted twice), as a (Cout, 1) column for lane-broadcast.
    bias = (b1 + 2.0 * b2 + b3 + b4).reshape(Cout, 1).astype(jnp.float32)

    w_spec = pl.BlockSpec((Cout, Cin), lambda *_: (0, 0))   # resident, full extent
    b_spec = pl.BlockSpec((Cout, 1), lambda *_: (0, 0))

    small = (N * hw_pad <= SMALL_PIXELS) and (hw_pad <= MAX_TILE_HW)
    if small:
        # One grid step, full-extent blocks, in-kernel batch loop.
        grid = (1,)
        x_spec = pl.BlockSpec((N, Cin, hw_pad), lambda i: (0, 0, 0))
        out_spec = pl.BlockSpec((N, Cout, hw_pad), lambda i: (0, 0, 0))
        kernel = _fused_conv1x1_small_kernel
        dims = ("arbitrary",)
    else:
        grid = (N, hw_pad // tile_hw)
        x_spec = pl.BlockSpec((1, Cin, tile_hw), lambda n, t: (n, 0, t))
        out_spec = pl.BlockSpec((1, Cout, tile_hw), lambda n, t: (n, 0, t))
        kernel = _fused_conv1x1_kernel
        dims = ("parallel", "parallel")

    out = pl.pallas_call(
        kernel,
        out_shape=jax.ShapeDtypeStruct((N, Cout, hw_pad), jnp.float32),
        grid_spec=pltpu.PrefetchScalarGridSpec(
            num_scalar_prefetch=0,
            grid=grid,
            in_specs=[x_spec, x_spec, w_spec, w_spec, b_spec],
            out_specs=out_spec,
        ),
        compiler_params=pltpu.CompilerParams(dimension_semantics=dims),
    )(x1_r, x2_r, w13, w24, bias)

    if hw_pad != HW:
        out = out[:, :, :HW]
    # Free reshape back to NCHW.
    return out.reshape(N, Cout, H, W)


def _reference(x1, x2, w1, w2, w3, w4, b1, b2, b3, b4):
    def conv1x1(x, w, b):
        # x: NCHW, w: (Cout, Cin)
        y = jnp.einsum('nchw,oc->nohw', x, w)
        return y + b.reshape(1, -1, 1, 1)
    v1 = conv1x1(x1, w1, b1)
    v2 = conv1x1(x2, w2, b2)
    v3 = conv1x1(x1, w3, b3)
    v4 = conv1x1(x2, w4, b4)
    return v1 + v2 + v3 + v4 + v2


if __name__ == "__main__":
    key = jax.random.PRNGKey(0)
    ks = jax.random.split(key, 12)

    Cin, Cout = 3, 8

    # Deterministic parameter init (PyTorch Conv2d weight (Cout, Cin, 1, 1) -> (Cout, Cin)).
    def winit(k):
        return jax.random.normal(k, (Cout, Cin), dtype=jnp.float32) * 0.1

    def binit(k):
        return jax.random.normal(k, (Cout,), dtype=jnp.float32) * 0.1

    w1, w2, w3, w4 = winit(ks[2]), winit(ks[3]), winit(ks[4]), winit(ks[5])
    b1, b2, b3, b4 = binit(ks[6]), binit(ks[7]), binit(ks[8]), binit(ks[9])

    # --- Test 1: module-spec shape (1, 3, 32, 32) -> small fast path ---------
    N, H, W = 1, 32, 32
    x1 = jax.random.normal(ks[0], (N, Cin, H, W), dtype=jnp.float32)
    x2 = jax.random.normal(ks[1], (N, Cin, H, W), dtype=jnp.float32)

    out = fused_model_forward(x1, x2, w1, w2, w3, w4, b1, b2, b3, b4)
    out = jax.block_until_ready(out)
    ref = _reference(x1, x2, w1, w2, w3, w4, b1, b2, b3, b4)
    assert out.shape == (N, Cout, H, W)
    assert jnp.allclose(out, ref, atol=1e-4, rtol=1e-4)

    # --- Test 2: non-128-multiple H*W with N=1 -> generic tiled path with
    #             spatial padding and a >=2-way parallel grid --------------------
    N2, H2, W2 = 1, 72, 72
    x1b = jax.random.normal(ks[10], (N2, Cin, H2, W2), dtype=jnp.float32)
    x2b = jax.random.normal(ks[11], (N2, Cin, H2, W2), dtype=jnp.float32)

    out2 = fused_model_forward(x1b, x2b, w1, w2, w3, w4, b1, b2, b3, b4)
    out2 = jax.block_until_ready(out2)
    ref2 = _reference(x1b, x2b, w1, w2, w3, w4, b1, b2, b3, b4)
    assert out2.shape == (N2, Cout, H2, W2)
    assert jnp.allclose(out2, ref2, atol=1e-4, rtol=1e-4)

    print("KERNEL_OK")
</pallas_src>

<mosaic_0001>
module attributes {stable_mosaic.version = 11 : i64} {
  func.func @_fused_conv1x1_small_kernel(%arg0: i32, %arg1: memref<1x3x1024xf32, #tpu.memory_space<vmem>>, %arg2: memref<1x3x1024xf32, #tpu.memory_space<vmem>>, %arg3: memref<8x3xf32, #tpu.memory_space<vmem>>, %arg4: memref<8x3xf32, #tpu.memory_space<vmem>>, %arg5: memref<8x1xf32, #tpu.memory_space<vmem>>, %arg6: memref<1x8x1024xf32, #tpu.memory_space<vmem>>) attributes {dimension_semantics = [#tpu.dimension_semantics<arbitrary>], iteration_bounds = array<i64: 1>, scalar_prefetch = 0 : i64, scratch_operands = 0 : i64, tpu.core_type = #tpu.core_type<tc>, window_params = [{pipeline_mode = #tpu.pipeline_mode<synchronous>, transform_indices = @transform_0, window_bounds = array<i64: 1, 3, 1024>}, {pipeline_mode = #tpu.pipeline_mode<synchronous>, transform_indices = @transform_1, window_bounds = array<i64: 1, 3, 1024>}, {pipeline_mode = #tpu.pipeline_mode<synchronous>, transform_indices = @transform_2, window_bounds = array<i64: 8, 3>}, {pipeline_mode = #tpu.pipeline_mode<synchronous>, transform_indices = @transform_3, window_bounds = array<i64: 8, 3>}, {pipeline_mode = #tpu.pipeline_mode<synchronous>, transform_indices = @transform_4, window_bounds = array<i64: 8, 1>}, {pipeline_mode = #tpu.pipeline_mode<synchronous>, transform_indices = @transform_5, window_bounds = array<i64: 1, 8, 1024>}]} {
    %c0 = arith.constant 0 : index
    %c0_0 = arith.constant 0 : index
    %0 = vector.load %arg3[%c0, %c0_0] : memref<8x3xf32, #tpu.memory_space<vmem>>, vector<8x3xf32>
    %c0_1 = arith.constant 0 : index
    %c0_2 = arith.constant 0 : index
    %c0_3 = arith.constant 0 : index
    %1 = vector.load %arg1[%c0_1, %c0_2, %c0_3] : memref<1x3x1024xf32, #tpu.memory_space<vmem>>, vector<1x3x1024xf32>
    %2 = vector.shape_cast %1 : vector<1x3x1024xf32> to vector<3x1024xf32>
    %cst = arith.constant dense<0.000000e+00> : vector<8x1024xf32>
    %3 = tpu.matmul %0, %2, %cst {dimension_numbers = #tpu.dot_dimension_numbers<[1], [0], [0], [1], [0, 0, 1, 1], [], []>} : vector<8x3xf32>, vector<3x1024xf32>, vector<8x1024xf32> -> vector<8x1024xf32>
    %c0_4 = arith.constant 0 : index
    %c0_5 = arith.constant 0 : index
    %4 = vector.load %arg4[%c0_4, %c0_5] : memref<8x3xf32, #tpu.memory_space<vmem>>, vector<8x3xf32>
    %c0_6 = arith.constant 0 : index
    %c0_7 = arith.constant 0 : index
    %c0_8 = arith.constant 0 : index
    %5 = vector.load %arg2[%c0_6, %c0_7, %c0_8] : memref<1x3x1024xf32, #tpu.memory_space<vmem>>, vector<1x3x1024xf32>
    %6 = vector.shape_cast %5 : vector<1x3x1024xf32> to vector<3x1024xf32>
    %cst_9 = arith.constant dense<0.000000e+00> : vector<8x1024xf32>
    %7 = tpu.matmul %4, %6, %cst_9 {dimension_numbers = #tpu.dot_dimension_numbers<[1], [0], [0], [1], [0, 0, 1, 1], [], []>} : vector<8x3xf32>, vector<3x1024xf32>, vector<8x1024xf32> -> vector<8x1024xf32>
    %8 = arith.addf %3, %7 : vector<8x1024xf32>
    %c0_10 = arith.constant 0 : index
    %c0_11 = arith.constant 0 : index
    %9 = vector.load %arg5[%c0_10, %c0_11] : memref<8x1xf32, #tpu.memory_space<vmem>>, vector<8x1xf32>
    %10 = vector.broadcast %9 : vector<8x1xf32> to vector<8x1024xf32>
    %11 = arith.addf %8, %10 : vector<8x1024xf32>
    %c0_12 = arith.constant 0 : index
    %c0_13 = arith.constant 0 : index
    %c0_14 = arith.constant 0 : index
    %12 = vector.load %arg6[%c0_12, %c0_13, %c0_14] : memref<1x8x1024xf32, #tpu.memory_space<vmem>>, vector<1x8x1024xf32>
    %13 = vector.shape_cast %12 : vector<1x8x1024xf32> to vector<8x1024xf32>
    %14 = vector.shape_cast %11 : vector<8x1024xf32> to vector<1x8x1024xf32>
    tpu.vector_store %arg6[%c0_12, %c0_13, %c0_14], %14 {strides = array<i32>} : memref<1x8x1024xf32, #tpu.memory_space<vmem>>, vector<1x8x1024xf32>,
    return
  }
  func.func @transform_0(%arg0: i32) -> (i32, i32, i32) {
    %c0_i32 = arith.constant 0 : i32
    %c0_i32_0 = arith.constant 0 : i32
    %c0_i32_1 = arith.constant 0 : i32
    %c0_i32_2 = arith.constant 0 : i32
    return %c0_i32, %c0_i32_0, %c0_i32_1 : i32, i32, i32
  }
  func.func @transform_1(%arg0: i32) -> (i32, i32, i32) {
    %c0_i32 = arith.constant 0 : i32
    %c0_i32_0 = arith.constant 0 : i32
    %c0_i32_1 = arith.constant 0 : i32
    %c0_i32_2 = arith.constant 0 : i32
    return %c0_i32, %c0_i32_0, %c0_i32_1 : i32, i32, i32
  }
  func.func @transform_2(%arg0: i32) -> (i32, i32) {
    %c0_i32 = arith.constant 0 : i32
    %c0_i32_0 = arith.constant 0 : i32
    %c0_i32_1 = arith.constant 0 : i32
    return %c0_i32, %c0_i32_0 : i32, i32
  }
  func.func @transform_3(%arg0: i32) -> (i32, i32) {
    %c0_i32 = arith.constant 0 : i32
    %c0_i32_0 = arith.constant 0 : i32
    %c0_i32_1 = arith.constant 0 : i32
    return %c0_i32, %c0_i32_0 : i32, i32
  }
  func.func @transform_4(%arg0: i32) -> (i32, i32) {
    %c0_i32 = arith.constant 0 : i32
    %c0_i32_0 = arith.constant 0 : i32
    %c0_i32_1 = arith.constant 0 : i32
    return %c0_i32, %c0_i32_0 : i32, i32
  }
  func.func @transform_5(%arg0: i32) -> (i32, i32, i32) {
    %c0_i32 = arith.constant 0 : i32
    %c0_i32_0 = arith.constant 0 : i32
    %c0_i32_1 = arith.constant 0 : i32
    %c0_i32_2 = arith.constant 0 : i32
    return %c0_i32, %c0_i32_0, %c0_i32_1 : i32, i32, i32
  }
}

</mosaic_0001>

<llo_original>
// kernel: tpu_custom_call.1
$region0: #{tpu_custom_call.1}
  #allocation0 [shape = 'u32[]', space=smem, size = 0x4, offset = 0x4, fixed_abs, tag = 'smem constant byte address 0x4 - core index']
  #allocation1 [shape = 'u32[144,128]{1,0:T(1,128)}', space=vmem, size = 0x12000, scoped, tag = 'internal scratch']
  %s0 = inlined_call_operand.vmem [shape: f32[1,3,1024], index: 0, kind: input, shape index: {}]
  %s1 = inlined_call_operand.vmem [shape: f32[1,3,1024], index: 1, kind: input, shape index: {}]
  %s2 = inlined_call_operand.vmem [shape: f32[8,3], index: 2, kind: input, shape index: {}]
  %s3 = inlined_call_operand.vmem [shape: f32[8,3], index: 3, kind: input, shape index: {}]
  %s4 = inlined_call_operand.vmem [shape: f32[8,1], index: 4, kind: input, shape index: {}]
  %s5 = inlined_call_operand.hbm [shape: f32[1,8,1024], index: 5, kind: output, shape index: {}]
  %s6 = sld [smem:[#allocation0]]
  $region30: #{tpu_custom_call.1} parent=0
    _
  %s8 = ssub.s32 1, %s6
  %s9 = scalar_select 0, %s8, %s6
  $region1: #{tpu_custom_call.1} parent=0
    #allocation2 [shape = 'u8[32768]{0}', space=vmem, size = 0x8000, scoped, tag = 'output window, operand 0, single buffered']
    #allocation3 [shape = 's32[1]{0}', space=sflag, size = 0x4, scoped, tag = 'scoped memory for tpu_custom_call.1']
    %10 = vsyncpa [#allocation3], 0
    // Predicated region
    $region2: #{tpu_custom_call.1} parent=1 // pred_check
      _
    $region3: #{tpu_custom_call.1} parent=1 // pred_check_branch
      %12 = sbr.rel (0) target = $region5
    $region4: #{tpu_custom_call.1} parent=1 // pred_region
      _
    $region5: #{tpu_custom_call.1} parent=1 // pred_fallthru
      _
    // Predicated region
    $region6: #{tpu_custom_call.1} parent=1 // pred_check
      _
    $region7: #{tpu_custom_call.1} parent=1 // pred_check_branch
      %14 = sbr.rel (0) target = $region9
    $region8: #{tpu_custom_call.1} parent=1 // pred_region
      _
    $region9: #{tpu_custom_call.1} parent=1 // pred_fallthru
      _
    // Predicated region
    $region10: #{tpu_custom_call.1} parent=1 // pred_check
      _
    $region11: #{tpu_custom_call.1} parent=1 // pred_check_branch
      %16 = sbr.rel (0) target = $region13
    $region12: #{tpu_custom_call.1} parent=1 // pred_region
      _
    $region13: #{tpu_custom_call.1} parent=1 // pred_fallthru
      _
    // Predicated region
    $region14: #{tpu_custom_call.1} parent=1 // pred_check
      _
    $region15: #{tpu_custom_call.1} parent=1 // pred_check_branch
      %18 = sbr.rel (0) target = $region17
    $region16: #{tpu_custom_call.1} parent=1 // pred_region
      _
    $region17: #{tpu_custom_call.1} parent=1 // pred_fallthru
      _
    // Predicated region
    $region18: #{tpu_custom_call.1} parent=1 // pred_check
      _
    $region19: #{tpu_custom_call.1} parent=1 // pred_check_branch
      %20 = sbr.rel (0) target = $region21
    $region20: #{tpu_custom_call.1} parent=1 // pred_region
      _
    $region21: #{tpu_custom_call.1} parent=1 // pred_fallthru
      _
    %v21 = vld [vmem:[%s2] sm:$0xff]
    %v22 = vld [vmem:[%s0] sm:$0x77]
    %v23 = vld [vmem:[%s0 + $0x8] sm:$0x77]
    %v24 = vld [vmem:[%s0 + $0x10] sm:$0x77]
    %v25 = vld [vmem:[%s0 + $0x18] sm:$0x77]
    %v26 = vld [vmem:[%s3] sm:$0xff]
    %v27 = vld [vmem:[%s1] sm:$0x77]
    %v28 = vld [vmem:[%s1 + $0x8] sm:$0x77]
    %v29 = vld [vmem:[%s1 + $0x10] sm:$0x77]
    %v30 = vld [vmem:[%s1 + $0x18] sm:$0x77]
    %v35 = vcombine.high %v27, %v27
    %v36 = vcombine.high %v28, %v28
    %v37 = vcombine.high %v29, %v29
    %v38 = vcombine.high %v30, %v30
    %vm39 = vcmask 23552
    %v41 = vsel %vm39, %v26, 0
    %vm43 = vcmask 1042432
    %v44 = vsel %vm43, %v27, 0
    %v46 = vsel %vm43, %v35, 0
    %v48 = vsel %vm43, %v28, 0
    %v50 = vsel %vm43, %v36, 0
    %v52 = vsel %vm43, %v29, 0
    %v54 = vsel %vm43, %v37, 0
    %v56 = vsel %vm43, %v30, 0
    %v58 = vsel %vm43, %v38, 0
    %60 = vmatprep.subr.mxu0 0.0
    %61 = vmatpush1.msra.mxu0 0.0
    %62 = vmatprep.subr.mxu0 0.0
    %63 = vmatpush1.msra.mxu0 0.0
    %64 = vmatprep.subr.mxu0 0.0
    %65 = vmatpush1.msra.mxu0 0.0
    %66 = vmatprep.subr.mxu0 0.0
    %67 = vmatpush1.msra.mxu0 0.0
    %68 = vmatprep.subr.mxu0 0.0
    %69 = vmatpush1.msra.mxu0 0.0
    %70 = vmatprep.subr.mxu0 0.0
    %71 = vmatpush1.msra.mxu0 0.0
    %72 = vmatprep.subr.mxu0 0.0
    %73 = vmatpush1.msra.mxu0 0.0
    %74 = vmatprep.subr.mxu0 0.0
    %75 = vmatpush1.msra.mxu0 0.0
    %76 = vmatprep.subr.mxu0 0.0
    %77 = vmatpush1.msra.mxu0 0.0
    %78 = vmatprep.subr.mxu0 0.0
    %79 = vmatpush1.msra.mxu0 0.0
    %80 = vmatprep.subr.mxu0 0.0
    %81 = vmatpush1.msra.mxu0 0.0
    %82 = vmatprep.subr.mxu0 0.0
    %83 = vmatpush1.msra.mxu0 0.0
    %84 = vmatprep.subr.mxu0 0.0
    %85 = vmatpush1.msra.mxu0 0.0
    %86 = vmatprep.subr.mxu0 0.0
    %87 = vmatpush1.msra.mxu0 0.0
    %88 = vmatprep.subr.mxu0 0.0
    %89 = vmatpush1.msra.mxu0 0.0
    %90 = vmatprep.subr.mxu0 %v46
    %91 = vmatpush1.msra.mxu0 %v44
    %92 = vmatprep.subr.mxu0 0.0
    %93 = vmatpush2.msra.mxu0 0.0
    %94 = vmatprep.subr.mxu0 0.0
    %95 = vmatpush2.msra.mxu0 0.0
    %96 = vmatprep.subr.mxu0 0.0
    %97 = vmatpush2.msra.mxu0 0.0
    %98 = vmatprep.subr.mxu0 0.0
    %99 = vmatpush2.msra.mxu0 0.0
    %100 = vmatprep.subr.mxu0 0.0
    %101 = vmatpush2.msra.mxu0 0.0
    %102 = vmatprep.subr.mxu0 0.0
    %103 = vmatpush2.msra.mxu0 0.0
    %104 = vmatprep.subr.mxu0 0.0
    %105 = vmatpush2.msra.mxu0 0.0
    %106 = vmatprep.subr.mxu0 0.0
    %107 = vmatpush2.msra.mxu0 0.0
    %108 = vmatprep.subr.mxu0 0.0
    %109 = vmatpush2.msra.mxu0 0.0
    %110 = vmatprep.subr.mxu0 0.0
    %111 = vmatpush2.msra.mxu0 0.0
    %112 = vmatprep.subr.mxu0 0.0
    %113 = vmatpush2.msra.mxu0 0.0
    %114 = vmatprep.subr.mxu0 0.0
    %115 = vmatpush2.msra.mxu0 0.0
    %116 = vmatprep.subr.mxu0 0.0
    %117 = vmatpush2.msra.mxu0 0.0
    %118 = vmatprep.subr.mxu0 0.0
    %119 = vmatpush2.msra.mxu0 0.0
    %120 = vmatprep.subr.mxu0 0.0
    %121 = vmatpush2.msra.mxu0 0.0
    %122 = vmatprep.subr.mxu0 0.0
    %123 = vmatpush2.msra.mxu0 0.0
    %124 = vmatprep.mubr.f32.mxu0 0.0
    %125 = vmatmul.mubr.f32.gmra.mxu0 %v41
    %v126 = vpop.f32.mrf.mxu0
    %v127 = vadd.f32 0.0, %v126
    %v128 = vpop.f32.mrf.mxu0
    %v129 = vadd.f32 0.0, %v128
    %130 = vdwg.mxu0
    %131 = vmatprep.subr.mxu0 0.0
    %132 = vmatpush1.msra.mxu0 0.0
    %133 = vmatprep.subr.mxu0 0.0
    %134 = vmatpush1.msra.mxu0 0.0
    %135 = vmatprep.subr.mxu0 0.0
    %136 = vmatpush1.msra.mxu0 0.0
    %137 = vmatprep.subr.mxu0 0.0
    %138 = vmatpush1.msra.mxu0 0.0
    %139 = vmatprep.subr.mxu0 0.0
    %140 = vmatpush1.msra.mxu0 0.0
    %141 = vmatprep.subr.mxu0 0.0
    %142 = vmatpush1.msra.mxu0 0.0
    %143 = vmatprep.subr.mxu0 0.0
    %144 = vmatpush1.msra.mxu0 0.0
    %145 = vmatprep.subr.mxu0 0.0
    %146 = vmatpush1.msra.mxu0 0.0
    %147 = vmatprep.subr.mxu0 0.0
    %148 = vmatpush1.msra.mxu0 0.0
    %149 = vmatprep.subr.mxu0 0.0
    %150 = vmatpush1.msra.mxu0 0.0
    %151 = vmatprep.subr.mxu0 0.0
    %152 = vmatpush1.msra.mxu0 0.0
    %153 = vmatprep.subr.mxu0 0.0
    %154 = vmatpush1.msra.mxu0 0.0
    %155 = vmatprep.subr.mxu0 0.0
    %156 = vmatpush1.msra.mxu0 0.0
    %157 = vmatprep.subr.mxu0 0.0
    %158 = vmatpush1.msra.mxu0 0.0
    %159 = vmatprep.subr.mxu0 0.0
    %160 = vmatpush1.msra.mxu0 0.0
    %161 = vmatprep.subr.mxu0 %v50
    %162 = vmatpush1.msra.mxu0 %v48
    %163 = vmatprep.subr.mxu0 0.0
    %164 = vmatpush2.msra.mxu0 0.0
    %165 = vmatprep.subr.mxu0 0.0
    %166 = vmatpush2.msra.mxu0 0.0
    %167 = vmatprep.subr.mxu0 0.0
    %168 = vmatpush2.msra.mxu0 0.0
    %169 = vmatprep.subr.mxu0 0.0
    %170 = vmatpush2.msra.mxu0 0.0
    %171 = vmatprep.subr.mxu0 0.0
    %172 = vmatpush2.msra.mxu0 0.0
    %173 = vmatprep.subr.mxu0 0.0
    %174 = vmatpush2.msra.mxu0 0.0
    %175 = vmatprep.subr.mxu0 0.0
    %176 = vmatpush2.msra.mxu0 0.0
    %177 = vmatprep.subr.mxu0 0.0
    %178 = vmatpush2.msra.mxu0 0.0
    %179 = vmatprep.subr.mxu0 0.0
    %180 = vmatpush2.msra.mxu0 0.0
    %181 = vmatprep.subr.mxu0 0.0
    %182 = vmatpush2.msra.mxu0 0.0
    %183 = vmatprep.subr.mxu0 0.0
    %184 = vmatpush2.msra.mxu0 0.0
    %185 = vmatprep.subr.mxu0 0.0
    %186 = vmatpush2.msra.mxu0 0.0
    %187 = vmatprep.subr.mxu0 0.0
    %188 = vmatpush2.msra.mxu0 0.0
    %189 = vmatprep.subr.mxu0 0.0
    %190 = vmatpush2.msra.mxu0 0.0
    %191 = vmatprep.subr.mxu0 0.0
    %192 = vmatpush2.msra.mxu0 0.0
    %193 = vmatprep.subr.mxu0 0.0
    %194 = vmatpush2.msra.mxu0 0.0
    %195 = vmatprep.mubr.f32.mxu0 0.0
    %196 = vmatmul.mubr.f32.gmra.mxu0 %v41
    %v197 = vpop.f32.mrf.mxu0
    %v198 = vadd.f32 0.0, %v197
    %v199 = vpop.f32.mrf.mxu0
    %v200 = vadd.f32 0.0, %v199
    %201 = vdwg.mxu0
    %202 = vmatprep.subr.mxu0 0.0
    %203 = vmatpush1.msra.mxu0 0.0
    %204 = vmatprep.subr.mxu0 0.0
    %205 = vmatpush1.msra.mxu0 0.0
    %206 = vmatprep.subr.mxu0 0.0
    %207 = vmatpush1.msra.mxu0 0.0
    %208 = vmatprep.subr.mxu0 0.0
    %209 = vmatpush1.msra.mxu0 0.0
    %210 = vmatprep.subr.mxu0 0.0
    %211 = vmatpush1.msra.mxu0 0.0
    %212 = vmatprep.subr.mxu0 0.0
    %213 = vmatpush1.msra.mxu0 0.0
    %214 = vmatprep.subr.mxu0 0.0
    %215 = vmatpush1.msra.mxu0 0.0
    %216 = vmatprep.subr.mxu0 0.0
    %217 = vmatpush1.msra.mxu0 0.0
    %218 = vmatprep.subr.mxu0 0.0
    %219 = vmatpush1.msra.mxu0 0.0
    %220 = vmatprep.subr.mxu0 0.0
    %221 = vmatpush1.msra.mxu0 0.0
    %222 = vmatprep.subr.mxu0 0.0
    %223 = vmatpush1.msra.mxu0 0.0
    %224 = vmatprep.subr.mxu0 0.0
    %225 = vmatpush1.msra.mxu0 0.0
    %226 = vmatprep.subr.mxu0 0.0
    %227 = vmatpush1.msra.mxu0 0.0
    %228 = vmatprep.subr.mxu0 0.0
    %229 = vmatpush1.msra.mxu0 0.0
    %230 = vmatprep.subr.mxu0 0.0
    %231 = vmatpush1.msra.mxu0 0.0
    %232 = vmatprep.subr.mxu0 %v54
    %233 = vmatpush1.msra.mxu0 %v52
    %234 = vmatprep.subr.mxu0 0.0
    %235 = vmatpush2.msra.mxu0 0.0
    %236 = vmatprep.subr.mxu0 0.0
    %237 = vmatpush2.msra.mxu0 0.0
    %238 = vmatprep.subr.mxu0 0.0
    %239 = vmatpush2.msra.mxu0 0.0
    %240 = vmatprep.subr.mxu0 0.0
    %241 = vmatpush2.msra.mxu0 0.0
    %242 = vmatprep.subr.mxu0 0.0
    %243 = vmatpush2.msra.mxu0 0.0
    %244 = vmatprep.subr.mxu0 0.0
    %245 = vmatpush2.msra.mxu0 0.0
    %246 = vmatprep.subr.mxu0 0.0
    %247 = vmatpush2.msra.mxu0 0.0
    %248 = vmatprep.subr.mxu0 0.0
    %249 = vmatpush2.msra.mxu0 0.0
    %250 = vmatprep.subr.mxu0 0.0
    %251 = vmatpush2.msra.mxu0 0.0
    %252 = vmatprep.subr.mxu0 0.0
    %253 = vmatpush2.msra.mxu0 0.0
    %254 = vmatprep.subr.mxu0 0.0
    %255 = vmatpush2.msra.mxu0 0.0
    %256 = vmatprep.subr.mxu0 0.0
    %257 = vmatpush2.msra.mxu0 0.0
    %258 = vmatprep.subr.mxu0 0.0
    %259 = vmatpush2.msra.mxu0 0.0
    %260 = vmatprep.subr.mxu0 0.0
    %261 = vmatpush2.msra.mxu0 0.0
    %262 = vmatprep.subr.mxu0 0.0
    %263 = vmatpush2.msra.mxu0 0.0
    %264 = vmatprep.subr.mxu0 0.0
    %265 = vmatpush2.msra.mxu0 0.0
    %266 = vmatprep.mubr.f32.mxu0 0.0
    %267 = vmatmul.mubr.f32.gmra.mxu0 %v41
    %v268 = vpop.f32.mrf.mxu0
    %v269 = vadd.f32 0.0, %v268
    %v270 = vpop.f32.mrf.mxu0
    %v271 = vadd.f32 0.0, %v270
    %272 = vdwg.mxu0
    %273 = vmatprep.subr.mxu0 0.0
    %274 = vmatpush1.msra.mxu0 0.0
    %275 = vmatprep.subr.mxu0 0.0
    %276 = vmatpush1.msra.mxu0 0.0
    %277 = vmatprep.subr.mxu0 0.0
    %278 = vmatpush1.msra.mxu0 0.0
    %279 = vmatprep.subr.mxu0 0.0
    %280 = vmatpush1.msra.mxu0 0.0
    %281 = vmatprep.subr.mxu0 0.0
    %282 = vmatpush1.msra.mxu0 0.0
    %283 = vmatprep.subr.mxu0 0.0
    %284 = vmatpush1.msra.mxu0 0.0
    %285 = vmatprep.subr.mxu0 0.0
    %286 = vmatpush1.msra.mxu0 0.0
    %287 = vmatprep.subr.mxu0 0.0
    %288 = vmatpush1.msra.mxu0 0.0
    %289 = vmatprep.subr.mxu0 0.0
    %290 = vmatpush1.msra.mxu0 0.0
    %291 = vmatprep.subr.mxu0 0.0
    %292 = vmatpush1.msra.mxu0 0.0
    %293 = vmatprep.subr.mxu0 0.0
    %294 = vmatpush1.msra.mxu0 0.0
    %295 = vmatprep.subr.mxu0 0.0
    %296 = vmatpush1.msra.mxu0 0.0
    %297 = vmatprep.subr.mxu0 0.0
    %298 = vmatpush1.msra.mxu0 0.0
    %299 = vmatprep.subr.mxu0 0.0
    %300 = vmatpush1.msra.mxu0 0.0
    %301 = vmatprep.subr.mxu0 0.0
    %302 = vmatpush1.msra.mxu0 0.0
    %303 = vmatprep.subr.mxu0 %v58
    %304 = vmatpush1.msra.mxu0 %v56
    %305 = vmatprep.subr.mxu0 0.0
    %306 = vmatpush2.msra.mxu0 0.0
    %307 = vmatprep.subr.mxu0 0.0
    %308 = vmatpush2.msra.mxu0 0.0
    %309 = vmatprep.subr.mxu0 0.0
    %310 = vmatpush2.msra.mxu0 0.0
    %311 = vmatprep.subr.mxu0 0.0
    %312 = vmatpush2.msra.mxu0 0.0
    %313 = vmatprep.subr.mxu0 0.0
    %314 = vmatpush2.msra.mxu0 0.0
    %315 = vmatprep.subr.mxu0 0.0
    %316 = vmatpush2.msra.mxu0 0.0
    %317 = vmatprep.subr.mxu0 0.0
    %318 = vmatpush2.msra.mxu0 0.0
    %319 = vmatprep.subr.mxu0 0.0
    %320 = vmatpush2.msra.mxu0 0.0
    %321 = vmatprep.subr.mxu0 0.0
    %322 = vmatpush2.msra.mxu0 0.0
    %323 = vmatprep.subr.mxu0 0.0
    %324 = vmatpush2.msra.mxu0 0.0
    %325 = vmatprep.subr.mxu0 0.0
    %326 = vmatpush2.msra.mxu0 0.0
    %327 = vmatprep.subr.mxu0 0.0
    %328 = vmatpush2.msra.mxu0 0.0
    %329 = vmatprep.subr.mxu0 0.0
    %330 = vmatpush2.msra.mxu0 0.0
    %331 = vmatprep.subr.mxu0 0.0
    %332 = vmatpush2.msra.mxu0 0.0
    %333 = vmatprep.subr.mxu0 0.0
    %334 = vmatpush2.msra.mxu0 0.0
    %335 = vmatprep.subr.mxu0 0.0
    %336 = vmatpush2.msra.mxu0 0.0
    %337 = vmatprep.mubr.f32.mxu0 0.0
    %338 = vmatmul.mubr.f32.gmra.mxu0 %v41
    %v339 = vpop.f32.mrf.mxu0
    %v340 = vadd.f32 0.0, %v339
    %v341 = vpop.f32.mrf.mxu0
    %v342 = vadd.f32 0.0, %v341
    %343 = vdwg.mxu0
    %v348 = vcombine.high %v22, %v22
    %v349 = vcombine.high %v23, %v23
    %v350 = vcombine.high %v24, %v24
    %v351 = vcombine.high %v25, %v25
    %v353 = vsel %vm39, %v21, 0
    %v355 = vsel %vm43, %v22, 0
    %v357 = vsel %vm43, %v348, 0
    %v359 = vsel %vm43, %v23, 0
    %v361 = vsel %vm43, %v349, 0
    %v363 = vsel %vm43, %v24, 0
    %v365 = vsel %vm43, %v350, 0
    %v367 = vsel %vm43, %v25, 0
    %v369 = vsel %vm43, %v351, 0
    %371 = vmatprep.subr.mxu0 0.0
    %372 = vmatpush1.msra.mxu0 0.0
    %373 = vmatprep.subr.mxu0 0.0
    %374 = vmatpush1.msra.mxu0 0.0
    %375 = vmatprep.subr.mxu0 0.0
    %376 = vmatpush1.msra.mxu0 0.0
    %377 = vmatprep.subr.mxu0 0.0
    %378 = vmatpush1.msra.mxu0 0.0
    %379 = vmatprep.subr.mxu0 0.0
    %380 = vmatpush1.msra.mxu0 0.0
    %381 = vmatprep.subr.mxu0 0.0
    %382 = vmatpush1.msra.mxu0 0.0
    %383 = vmatprep.subr.mxu0 0.0
    %384 = vmatpush1.msra.mxu0 0.0
    %385 = vmatprep.subr.mxu0 0.0
    %386 = vmatpush1.msra.mxu0 0.0
    %387 = vmatprep.subr.mxu0 0.0
    %388 = vmatpush1.msra.mxu0 0.0
    %389 = vmatprep.subr.mxu0 0.0
    %390 = vmatpush1.msra.mxu0 0.0
    %391 = vmatprep.subr.mxu0 0.0
    %392 = vmatpush1.msra.mxu0 0.0
    %393 = vmatprep.subr.mxu0 0.0
    %394 = vmatpush1.msra.mxu0 0.0
    %395 = vmatprep.subr.mxu0 0.0
    %396 = vmatpush1.msra.mxu0 0.0
    %397 = vmatprep.subr.mxu0 0.0
    %398 = vmatpush1.msra.mxu0 0.0
    %399 = vmatprep.subr.mxu0 0.0
    %400 = vmatpush1.msra.mxu0 0.0
    %401 = vmatprep.subr.mxu0 %v357
    %402 = vmatpush1.msra.mxu0 %v355
    %403 = vmatprep.subr.mxu0 0.0
    %404 = vmatpush2.msra.mxu0 0.0
    %405 = vmatprep.subr.mxu0 0.0
    %406 = vmatpush2.msra.mxu0 0.0
    %407 = vmatprep.subr.mxu0 0.0
    %408 = vmatpush2.msra.mxu0 0.0
    %409 = vmatprep.subr.mxu0 0.0
    %410 = vmatpush2.msra.mxu0 0.0
    %411 = vmatprep.subr.mxu0 0.0
    %412 = vmatpush2.msra.mxu0 0.0
    %413 = vmatprep.subr.mxu0 0.0
    %414 = vmatpush2.msra.mxu0 0.0
    %415 = vmatprep.subr.mxu0 0.0
    %416 = vmatpush2.msra.mxu0 0.0
    %417 = vmatprep.subr.mxu0 0.0
    %418 = vmatpush2.msra.mxu0 0.0
    %419 = vmatprep.subr.mxu0 0.0
    %420 = vmatpush2.msra.mxu0 0.0
    %421 = vmatprep.subr.mxu0 0.0
    %422 = vmatpush2.msra.mxu0 0.0
    %423 = vmatprep.subr.mxu0 0.0
    %424 = vmatpush2.msra.mxu0 0.0
    %425 = vmatprep.subr.mxu0 0.0
    %426 = vmatpush2.msra.mxu0 0.0
    %427 = vmatprep.subr.mxu0 0.0
    %428 = vmatpush2.msra.mxu0 0.0
    %429 = vmatprep.subr.mxu0 0.0
    %430 = vmatpush2.msra.mxu0 0.0
    %431 = vmatprep.subr.mxu0 0.0
    %432 = vmatpush2.msra.mxu0 0.0
    %433 = vmatprep.subr.mxu0 0.0
    %434 = vmatpush2.msra.mxu0 0.0
    %435 = vmatprep.mubr.f32.mxu0 0.0
    %436 = vmatmul.mubr.f32.gmra.mxu0 %v353
    %v437 = vpop.f32.mrf.mxu0
    %v438 = vadd.f32 %v127, %v437
    %v439 = vpop.f32.mrf.mxu0
    %v440 = vadd.f32 %v129, %v439
    %441 = vdwg.mxu0
    %442 = vmatprep.subr.mxu0 0.0
    %443 = vmatpush1.msra.mxu0 0.0
    %444 = vmatprep.subr.mxu0 0.0
    %445 = vmatpush1.msra.mxu0 0.0
    %446 = vmatprep.subr.mxu0 0.0
    %447 = vmatpush1.msra.mxu0 0.0
    %448 = vmatprep.subr.mxu0 0.0
    %449 = vmatpush1.msra.mxu0 0.0
    %450 = vmatprep.subr.mxu0 0.0
    %451 = vmatpush1.msra.mxu0 0.0
    %452 = vmatprep.subr.mxu0 0.0
    %453 = vmatpush1.msra.mxu0 0.0
    %454 = vmatprep.subr.mxu0 0.0
    %455 = vmatpush1.msra.mxu0 0.0
    %456 = vmatprep.subr.mxu0 0.0
    %457 = vmatpush1.msra.mxu0 0.0
    %458 = vmatprep.subr.mxu0 0.0
    %459 = vmatpush1.msra.mxu0 0.0
    %460 = vmatprep.subr.mxu0 0.0
    %461 = vmatpush1.msra.mxu0 0.0
    %462 = vmatprep.subr.mxu0 0.0
    %463 = vmatpush1.msra.mxu0 0.0
    %464 = vmatprep.subr.mxu0 0.0
    %465 = vmatpush1.msra.mxu0 0.0
    %466 = vmatprep.subr.mxu0 0.0
    %467 = vmatpush1.msra.mxu0 0.0
    %468 = vmatprep.subr.mxu0 0.0
    %469 = vmatpush1.msra.mxu0 0.0
    %470 = vmatprep.subr.mxu0 0.0
    %471 = vmatpush1.msra.mxu0 0.0
    %472 = vmatprep.subr.mxu0 %v361
    %473 = vmatpush1.msra.mxu0 %v359
    %474 = vmatprep.subr.mxu0 0.0
    %475 = vmatpush2.msra.mxu0 0.0
    %476 = vmatprep.subr.mxu0 0.0
    %477 = vmatpush2.msra.mxu0 0.0
    %478 = vmatprep.subr.mxu0 0.0
    %479 = vmatpush2.msra.mxu0 0.0
    %480 = vmatprep.subr.mxu0 0.0
    %481 = vmatpush2.msra.mxu0 0.0
    %482 = vmatprep.subr.mxu0 0.0
    %483 = vmatpush2.msra.mxu0 0.0
    %484 = vmatprep.subr.mxu0 0.0
    %485 = vmatpush2.msra.mxu0 0.0
    %486 = vmatprep.subr.mxu0 0.0
    %487 = vmatpush2.msra.mxu0 0.0
    %488 = vmatprep.subr.mxu0 0.0
    %489 = vmatpush2.msra.mxu0 0.0
    %490 = vmatprep.subr.mxu0 0.0
    %491 = vmatpush2.msra.mxu0 0.0
    %492 = vmatprep.subr.mxu0 0.0
    %493 = vmatpush2.msra.mxu0 0.0
    %494 = vmatprep.subr.mxu0 0.0
    %495 = vmatpush2.msra.mxu0 0.0
    %496 = vmatprep.subr.mxu0 0.0
    %497 = vmatpush2.msra.mxu0 0.0
    %498 = vmatprep.subr.mxu0 0.0
    %499 = vmatpush2.msra.mxu0 0.0
    %500 = vmatprep.subr.mxu0 0.0
    %501 = vmatpush2.msra.mxu0 0.0
    %502 = vmatprep.subr.mxu0 0.0
    %503 = vmatpush2.msra.mxu0 0.0
    %504 = vmatprep.subr.mxu0 0.0
    %505 = vmatpush2.msra.mxu0 0.0
    %506 = vmatprep.mubr.f32.mxu0 0.0
    %507 = vmatmul.mubr.f32.gmra.mxu0 %v353
    %v508 = vpop.f32.mrf.mxu0
    %v509 = vadd.f32 %v198, %v508
    %v510 = vpop.f32.mrf.mxu0
    %v511 = vadd.f32 %v200, %v510
    %512 = vdwg.mxu0
    %513 = vmatprep.subr.mxu0 0.0
    %514 = vmatpush1.msra.mxu0 0.0
    %515 = vmatprep.subr.mxu0 0.0
    %516 = vmatpush1.msra.mxu0 0.0
    %517 = vmatprep.subr.mxu0 0.0
    %518 = vmatpush1.msra.mxu0 0.0
    %519 = vmatprep.subr.mxu0 0.0
    %520 = vmatpush1.msra.mxu0 0.0
    %521 = vmatprep.subr.mxu0 0.0
    %522 = vmatpush1.msra.mxu0 0.0
    %523 = vmatprep.subr.mxu0 0.0
    %524 = vmatpush1.msra.mxu0 0.0
    %525 = vmatprep.subr.mxu0 0.0
    %526 = vmatpush1.msra.mxu0 0.0
    %527 = vmatprep.subr.mxu0 0.0
    %528 = vmatpush1.msra.mxu0 0.0
    %529 = vmatprep.subr.mxu0 0.0
    %530 = vmatpush1.msra.mxu0 0.0
    %531 = vmatprep.subr.mxu0 0.0
    %532 = vmatpush1.msra.mxu0 0.0
    %533 = vmatprep.subr.mxu0 0.0
    %534 = vmatpush1.msra.mxu0 0.0
    %535 = vmatprep.subr.mxu0 0.0
    %536 = vmatpush1.msra.mxu0 0.0
    %537 = vmatprep.subr.mxu0 0.0
    %538 = vmatpush1.msra.mxu0 0.0
    %539 = vmatprep.subr.mxu0 0.0
    %540 = vmatpush1.msra.mxu0 0.0
    %541 = vmatprep.subr.mxu0 0.0
    %542 = vmatpush1.msra.mxu0 0.0
    %543 = vmatprep.subr.mxu0 %v365
    %544 = vmatpush1.msra.mxu0 %v363
    %545 = vmatprep.subr.mxu0 0.0
    %546 = vmatpush2.msra.mxu0 0.0
    %547 = vmatprep.subr.mxu0 0.0
    %548 = vmatpush2.msra.mxu0 0.0
    %549 = vmatprep.subr.mxu0 0.0
    %550 = vmatpush2.msra.mxu0 0.0
    %551 = vmatprep.subr.mxu0 0.0
    %552 = vmatpush2.msra.mxu0 0.0
    %553 = vmatprep.subr.mxu0 0.0
    %554 = vmatpush2.msra.mxu0 0.0
    %555 = vmatprep.subr.mxu0 0.0
    %556 = vmatpush2.msra.mxu0 0.0
    %557 = vmatprep.subr.mxu0 0.0
    %558 = vmatpush2.msra.mxu0 0.0
    %559 = vmatprep.subr.mxu0 0.0
    %560 = vmatpush2.msra.mxu0 0.0
    %561 = vmatprep.subr.mxu0 0.0
    %562 = vmatpush2.msra.mxu0 0.0
    %563 = vmatprep.subr.mxu0 0.0
    %564 = vmatpush2.msra.mxu0 0.0
    %565 = vmatprep.subr.mxu0 0.0
    %566 = vmatpush2.msra.mxu0 0.0
    %567 = vmatprep.subr.mxu0 0.0
    %568 = vmatpush2.msra.mxu0 0.0
    %569 = vmatprep.subr.mxu0 0.0
    %570 = vmatpush2.msra.mxu0 0.0
    %571 = vmatprep.subr.mxu0 0.0
    %572 = vmatpush2.msra.mxu0 0.0
    %573 = vmatprep.subr.mxu0 0.0
    %574 = vmatpush2.msra.mxu0 0.0
    %575 = vmatprep.subr.mxu0 0.0
    %576 = vmatpush2.msra.mxu0 0.0
    %577 = vmatprep.mubr.f32.mxu0 0.0
    %578 = vmatmul.mubr.f32.gmra.mxu0 %v353
    %v579 = vpop.f32.mrf.mxu0
    %v580 = vadd.f32 %v269, %v579
    %v581 = vpop.f32.mrf.mxu0
    %v582 = vadd.f32 %v271, %v581
    %583 = vdwg.mxu0
    %584 = vmatprep.subr.mxu0 0.0
    %585 = vmatpush1.msra.mxu0 0.0
    %586 = vmatprep.subr.mxu0 0.0
    %587 = vmatpush1.msra.mxu0 0.0
    %588 = vmatprep.subr.mxu0 0.0
    %589 = vmatpush1.msra.mxu0 0.0
    %590 = vmatprep.subr.mxu0 0.0
    %591 = vmatpush1.msra.mxu0 0.0
    %592 = vmatprep.subr.mxu0 0.0
    %593 = vmatpush1.msra.mxu0 0.0
    %594 = vmatprep.subr.mxu0 0.0
    %595 = vmatpush1.msra.mxu0 0.0
    %596 = vmatprep.subr.mxu0 0.0
    %597 = vmatpush1.msra.mxu0 0.0
    %598 = vmatprep.subr.mxu0 0.0
    %599 = vmatpush1.msra.mxu0 0.0
    %600 = vmatprep.subr.mxu0 0.0
    %601 = vmatpush1.msra.mxu0 0.0
    %602 = vmatprep.subr.mxu0 0.0
    %603 = vmatpush1.msra.mxu0 0.0
    %604 = vmatprep.subr.mxu0 0.0
    %605 = vmatpush1.msra.mxu0 0.0
    %606 = vmatprep.subr.mxu0 0.0
    %607 = vmatpush1.msra.mxu0 0.0
    %608 = vmatprep.subr.mxu0 0.0
    %609 = vmatpush1.msra.mxu0 0.0
    %610 = vmatprep.subr.mxu0 0.0
    %611 = vmatpush1.msra.mxu0 0.0
    %612 = vmatprep.subr.mxu0 0.0
    %613 = vmatpush1.msra.mxu0 0.0
    %614 = vmatprep.subr.mxu0 %v369
    %615 = vmatpush1.msra.mxu0 %v367
    %616 = vmatprep.subr.mxu0 0.0
    %617 = vmatpush2.msra.mxu0 0.0
    %618 = vmatprep.subr.mxu0 0.0
    %619 = vmatpush2.msra.mxu0 0.0
    %620 = vmatprep.subr.mxu0 0.0
    %621 = vmatpush2.msra.mxu0 0.0
    %622 = vmatprep.subr.mxu0 0.0
    %623 = vmatpush2.msra.mxu0 0.0
    %624 = vmatprep.subr.mxu0 0.0
    %625 = vmatpush2.msra.mxu0 0.0
    %626 = vmatprep.subr.mxu0 0.0
    %627 = vmatpush2.msra.mxu0 0.0
    %628 = vmatprep.subr.mxu0 0.0
    %629 = vmatpush2.msra.mxu0 0.0
    %630 = vmatprep.subr.mxu0 0.0
    %631 = vmatpush2.msra.mxu0 0.0
    %632 = vmatprep.subr.mxu0 0.0
    %633 = vmatpush2.msra.mxu0 0.0
    %634 = vmatprep.subr.mxu0 0.0
    %635 = vmatpush2.msra.mxu0 0.0
    %636 = vmatprep.subr.mxu0 0.0
    %637 = vmatpush2.msra.mxu0 0.0
    %638 = vmatprep.subr.mxu0 0.0
    %639 = vmatpush2.msra.mxu0 0.0
    %640 = vmatprep.subr.mxu0 0.0
    %641 = vmatpush2.msra.mxu0 0.0
    %642 = vmatprep.subr.mxu0 0.0
    %643 = vmatpush2.msra.mxu0 0.0
    %644 = vmatprep.subr.mxu0 0.0
    %645 = vmatpush2.msra.mxu0 0.0
    %646 = vmatprep.subr.mxu0 0.0
    %647 = vmatpush2.msra.mxu0 0.0
    %648 = vmatprep.mubr.f32.mxu0 0.0
    %649 = vmatmul.mubr.f32.gmra.mxu0 %v353
    %v650 = vpop.f32.mrf.mxu0
    %v651 = vadd.f32 %v340, %v650
    %v652 = vpop.f32.mrf.mxu0
    %v653 = vadd.f32 %v342, %v652
    %654 = vdwg.mxu0
    %v655 = vld [vmem:[%s4] sm:$0xff]
    %657 = vset.pattern.permute.xlu0 0
    %658 = vperm.xlu0 %657, %v655
    %v659 = vpop.permute.xlu0 %658
    %v661 = vadd.f32 %v438, %v659
    %v662 = vadd.f32 %v440, %v659
    %v663 = vadd.f32 %v509, %v659
    %v664 = vadd.f32 %v511, %v659
    %v665 = vadd.f32 %v580, %v659
    %v666 = vadd.f32 %v582, %v659
    %v667 = vadd.f32 %v651, %v659
    %v668 = vadd.f32 %v653, %v659
    %669 = vst [vmem:[#allocation2] sm:$0xff] %v661
    %670 = vst [vmem:[#allocation2 + $0x8] sm:$0xff] %v662
    %671 = vst [vmem:[#allocation2 + $0x10] sm:$0xff] %v663
    %672 = vst [vmem:[#allocation2 + $0x18] sm:$0xff] %v664
    %673 = vst [vmem:[#allocation2 + $0x20] sm:$0xff] %v665
    %674 = vst [vmem:[#allocation2 + $0x28] sm:$0xff] %v666
    %675 = vst [vmem:[#allocation2 + $0x30] sm:$0xff] %v667
    %676 = vst [vmem:[#allocation2 + $0x38] sm:$0xff] %v668
    // Predicated region
    $region22: #{tpu_custom_call.1} parent=1 // pred_check
      _
    $region23: #{tpu_custom_call.1} parent=1 // pred_check_branch
      %678 = sbr.rel (0) target = $region25
    $region24: #{tpu_custom_call.1} parent=1 // pred_region
      %s680 = ssub.s32 1024, 1024
      %681 = vsyncadd [#allocation3], %s680
      %s683 = sshll.u32 [#allocation2], 4
      %s684 = int_to_ptr.vmem [resolvable:$true] %s683
      %686 = dma.vmem_to_hbm [thread:$0]  %s684, 1024, %s5, [#allocation3]
    $region25: #{tpu_custom_call.1} parent=1 // pred_fallthru
      _
    // Predicated region
    $region26: #{tpu_custom_call.1} parent=1 // pred_check
      _
    $region27: #{tpu_custom_call.1} parent=1 // pred_check_branch
      %688 = sbr.rel (0) target = $region29
    $region28: #{tpu_custom_call.1} parent=1 // pred_region
      %689 = dma.done [#allocation3], 1024
    $region29: #{tpu_custom_call.1} parent=1 // pred_fallthru
      _
    %690 = vsyncpa [#allocation3], 1

</llo_original>
